<compile_context>
chip_gen: v5e
topology: v5e:2x2
jax: 0.10.0
libtpu: 0.0.40
codegen_flags: <defaults>
</compile_context>

<pallas_src>
import jax
import jax.numpy as jnp
from jax.experimental import pallas as pl
from jax.experimental.pallas import tpu as pltpu


def _round_up(x, m):
    return -(-x // m) * m


# ----------------------------------------------------------------------------
# Kernel 1: tiled graph propagation   encoder_weight_loc = rw(graph) @ E[:L]
# ----------------------------------------------------------------------------
def _graph_matmul_kernel(g_ref, e_ref, o_ref, acc_ref):
    @pl.when(pl.program_id(2) == 0)
    def _():
        acc_ref[...] = jnp.zeros_like(acc_ref)

    acc_ref[...] += jnp.dot(g_ref[...], e_ref[...],
                            preferred_element_type=jnp.float32)

    @pl.when(pl.program_id(2) == pl.num_programs(2) - 1)
    def _():
        o_ref[...] = acc_ref[...].astype(o_ref.dtype)


def graph_matmul(graph_rw, loc_emb):
    """(L, L) @ (L, H) -> (L, H) bf16; bf16 MXU operands, f32 accumulation.

    tn spans the whole padded hidden dim so the dominant LxL operand is
    streamed from HBM exactly once; tm/tk adapt to the problem size.
    """
    L, H = loc_emb.shape
    tm = 512 if L >= 512 else _round_up(L, 8)
    tk = 512 if L >= 512 else _round_up(L, 128)
    Np = _round_up(H, 128)
    if Np > 2048:                       # keep b/out/acc tiles VMEM-safe
        tn = 1024
        Np = _round_up(H, tn)
    else:
        tn = Np
    Mp = _round_up(L, tm)
    Kp = _round_up(L, tk)
    g = jnp.pad(graph_rw, ((0, Mp - L), (0, Kp - L))).astype(jnp.bfloat16)
    e = jnp.pad(loc_emb, ((0, Kp - L), (0, Np - H))).astype(jnp.bfloat16)
    out = pl.pallas_call(
        _graph_matmul_kernel,
        out_shape=jax.ShapeDtypeStruct((Mp, Np), jnp.bfloat16),
        grid=(Mp // tm, Np // tn, Kp // tk),
        in_specs=[pl.BlockSpec((tm, tk), lambda i, j, k: (i, k)),
                  pl.BlockSpec((tk, tn), lambda i, j, k: (k, j))],
        out_specs=pl.BlockSpec((tm, tn), lambda i, j, k: (i, j)),
        scratch_shapes=[pltpu.VMEM((tm, tn), jnp.float32)],
        compiler_params=pltpu.CompilerParams(
            dimension_semantics=("parallel", "parallel", "arbitrary"),
            vmem_limit_bytes=32 * 1024 * 1024),
    )(g, e)
    return out[:L, :H]


# ----------------------------------------------------------------------------
# Kernel 2: fused  out[u, s_tile, v_tile] = x_emb[u, s_tile] @ W1[:, v_tile]
#                                           + (p_u @ W2 + b)[u, v_tile]
# bf16 MXU operands, f32 accumulation; the user projection is hoisted to the
# wrapper (sequence-invariant) and added as a resident (1, tv) row.
# ----------------------------------------------------------------------------
def _fused_out_kernel(x_ref, pu_ref, w1_ref, o_ref):
    o_ref[...] = (jnp.dot(x_ref[...], w1_ref[...],
                          preferred_element_type=jnp.float32)
                  + pu_ref[...])            # (1, tv) broadcast over (tr, tv)


def fused_output(x_emb_um, pu_proj, w1, *, tr, tv):
    """Grid (Vp//tv, U, Sp//tr): v outermost so the W1 block index is constant
    across the inner (u, s) loops — W1 is DMA'd once per v-tile (once total),
    not once per (user, seq-tile)."""
    U, Sp, Hp = x_emb_um.shape
    Hp_w, Vp = w1.shape
    assert Hp == Hp_w
    grid = (Vp // tv, U, Sp // tr)
    return pl.pallas_call(
        _fused_out_kernel,
        out_shape=jax.ShapeDtypeStruct((U, Sp, Vp), jnp.float32),
        grid=grid,
        in_specs=[
            pl.BlockSpec((None, tr, Hp), lambda v, u, s: (u, s, 0)),   # x bf16
            pl.BlockSpec((None, 1, tv), lambda v, u, s: (u, 0, v)),    # pu f32
            pl.BlockSpec((Hp, tv), lambda v, u, s: (0, v)),            # W1 bf16
        ],
        out_specs=pl.BlockSpec((None, tr, tv), lambda v, u, s: (u, s, v)),
        compiler_params=pltpu.CompilerParams(
            dimension_semantics=("parallel", "parallel", "parallel"),
            vmem_limit_bytes=32 * 1024 * 1024),
    )(x_emb_um, pu_proj, w1)


# ----------------------------------------------------------------------------
# Parameter / graph setup (glue, plain JAX)
# ----------------------------------------------------------------------------
def random_walk_matrix(adj):
    """D^{-1} A, matching calculate_random_walk_matrix."""
    d = jnp.sum(adj, axis=1, keepdims=True)
    d_inv = jnp.where(d > 0, 1.0 / d, 0.0)
    return adj * d_inv


def init_params(key, input_size, user_count, hidden_size, lambda_loc=1.0):
    L = input_size - 2
    keys = jax.random.split(key, 5)
    encoder = jax.random.normal(keys[0], (input_size, hidden_size),
                                jnp.float32) * 0.1
    user_encoder = jax.random.normal(keys[1], (user_count, hidden_size),
                                     jnp.float32) * 0.1
    # fc: Linear(2*hidden -> input_size); stored transposed, split in half.
    fc_w = jax.random.normal(keys[2], (2 * hidden_size, input_size),
                             jnp.float32) * 0.1
    fc_b = jax.random.normal(keys[3], (1, input_size), jnp.float32) * 0.1
    # scalar MLP(1,1): [w1, b1, w2, b2]
    mlp = jnp.array([0.7, 0.1, 1.3, -0.05], dtype=jnp.float32)
    # location transition graph -> random-walk normalised (lambda*G + I)
    g_raw = jax.random.uniform(keys[4], (L, L), jnp.float32)
    graph_rw = random_walk_matrix(g_raw * lambda_loc
                                  + jnp.eye(L, dtype=jnp.float32))
    return dict(
        encoder=encoder,
        user_encoder=user_encoder,
        fc_w1=fc_w[:hidden_size],
        fc_w2=fc_w[hidden_size:],
        fc_b=fc_b,
        mlp=mlp,
        graph_rw=graph_rw,
    )


def _select_tiles(S, H, V, w1_budget_bytes=16 * 1024 * 1024):
    """Shape-adaptive, lane/sublane-dense tiles; W1 tile is VMEM-budgeted."""
    # sequence (sublane) tile
    Sp = _round_up(S, 8)
    if Sp > 256:
        tr = 256
        Sp = _round_up(S, tr)
    else:
        tr = Sp
    # hidden (contraction) dim, lane-dense; 256-multiples feed the 256-wide MXU
    Hp = _round_up(H, 256) if H > 128 else _round_up(H, 128)
    # output-feature tile: bound the double-buffered bf16 W1 block so the
    # working set fits v7x's 64 MiB VMEM as well as v5e/v6e's 128 MiB.
    cap = max(128, (w1_budget_bytes // (Hp * 2 * 2)) // 128 * 128)
    tv = min(1024, _round_up(V, 128), cap)
    Vp = _round_up(V, tv)
    return Sp, tr, Hp, tv, Vp


# ----------------------------------------------------------------------------
# Flashback forward (args mirror the PyTorch signature; unused args are dead
# code w.r.t. the returned output and therefore ignored)
# ----------------------------------------------------------------------------
def flashback_forward(params, x, x_adj, active_user):
    del x_adj  # adj_emb / x_adj_emb never reach the output in the reference
    E = params["encoder"]
    V, H = E.shape
    L = V - 2
    S, U = x.shape

    # 1) graph-propagated location embeddings (tiled Pallas MXU matmul, bf16)
    ew_loc = graph_matmul(params["graph_rw"], E[:L])                # (L,H) bf16
    encoder_weight = jnp.concatenate(
        [ew_loc.astype(jnp.float32), E[L:]], axis=0)                # (V,H) f32

    # 2) hoisted elementwise MLP(1,1): gather commutes with elementwise ops,
    #    so it is applied once to the (V, H) table instead of per token.
    # TODO(synk): MultiLayerPerceptron(1, 1) is not defined in the source;
    # implemented as an elementwise 1->1->1 ReLU MLP (preserves the (S, U, H)
    # shape as the original code requires).
    a1, b1, a2, b2 = params["mlp"]
    table = jnp.maximum(encoder_weight * a1 + b1, 0.0) * a2 + b2
    table = table.astype(jnp.bfloat16)                              # (V,H) bf16

    # 3) padded, user-major layout so the fused kernel sees dense tiles
    Sp, TR, Hp, TV, Vp = _select_tiles(S, H, V)
    table_p = jnp.pad(table, ((0, 0), (0, Hp - H)))                 # (V,Hp) bf16
    x_um = jnp.pad(x.T, ((0, 0), (0, Sp - S)))                      # (U,Sp)
    # embedding gather (XLA glue); bf16 halves the x_emb HBM round trip.
    # TODO(synk): fuse this gather into the kernel (scalar-prefetched ids +
    # manual DMA row gather) to remove the x_emb round trip at large S*U*H.
    x_emb_um = jnp.take(table_p, x_um, axis=0)                      # (U,Sp,Hp)

    p_u = jnp.take(params["user_encoder"], active_user.reshape(-1),
                   axis=0)                                          # (U,H)
    # hoisted sequence-invariant user projection: p_u @ W2 + b (tiny matmul)
    pu_proj = p_u @ params["fc_w2"] + params["fc_b"]                # (U,V) f32
    pu_proj = jnp.pad(pu_proj, ((0, 0), (0, Vp - V)))[:, None, :]   # (U,1,Vp)
    w1_p = jnp.pad(params["fc_w1"],
                   ((0, Hp - H), (0, Vp - V))).astype(jnp.bfloat16)  # (Hp,Vp)

    # 4) fused dot + user-bias add (Pallas kernel), then un-pad / re-layout
    out_um = fused_output(x_emb_um, pu_proj, w1_p, tr=TR, tv=TV)    # (U,Sp,Vp)
    # TODO(synk): this transpose is a full HBM round trip of the largest
    # tensor; consumers that accept user-major should take out_um[:, :S, :V].
    output = jnp.transpose(out_um[:, :S, :V], (1, 0, 2))            # (S,U,V)
    return output, None


def flashback_reference(params, x, active_user):
    """Pure-JAX reference mirroring the kernel's bf16 operand choices."""
    E = params["encoder"]
    L = E.shape[0] - 2
    g16 = params["graph_rw"].astype(jnp.bfloat16)
    e16 = E[:L].astype(jnp.bfloat16)
    ew_loc = jnp.dot(g16, e16, preferred_element_type=jnp.float32)
    ew_loc = ew_loc.astype(jnp.bfloat16).astype(jnp.float32)
    ew = jnp.concatenate([ew_loc, E[L:]], axis=0)
    a1, b1, a2, b2 = params["mlp"]
    table = (jnp.maximum(ew * a1 + b1, 0.0) * a2 + b2).astype(jnp.bfloat16)
    x_emb = table[x]                                                 # (S,U,H)
    p_u = params["user_encoder"][active_user.reshape(-1)]
    pu_proj = p_u @ params["fc_w2"] + params["fc_b"]                 # (U,V)
    out = jnp.dot(x_emb, params["fc_w1"].astype(jnp.bfloat16),
                  preferred_element_type=jnp.float32) + pu_proj
    return out


if __name__ == "__main__":
    input_size = 34        # number of locations + 2 special tokens (L = 32)
    user_count = 8
    hidden_size = 32
    seq_len = 8
    user_len = 2
    adj_len = 4

    key = jax.random.PRNGKey(0)
    k_par, k_x, k_adj, k_u = jax.random.split(key, 4)

    params = init_params(k_par, input_size, user_count, hidden_size)

    x = jax.random.randint(k_x, (seq_len, user_len), 0, input_size, jnp.int32)
    x_adj = jax.random.randint(k_adj, (seq_len, user_len, adj_len), 0,
                               input_size, jnp.int32)
    active_user = jax.random.randint(k_u, (1, user_len), 0, user_count,
                                     jnp.int32)

    out, _ = flashback_forward(params, x, x_adj, active_user)
    out = jax.block_until_ready(out)

    ref = flashback_reference(params, x, active_user)
    assert out.shape == (seq_len, user_len, input_size)
    assert jnp.allclose(out, ref, atol=2e-2, rtol=2e-2)

    print("KERNEL_OK")
</pallas_src>

<mosaic_0001>
module attributes {stable_mosaic.version = 11 : i64} {
  func.func @_graph_matmul_kernel(%arg0: i32, %arg1: i32, %arg2: i32, %arg3: memref<32x128xbf16, #tpu.memory_space<vmem>>, %arg4: memref<128x128xbf16, #tpu.memory_space<vmem>>, %arg5: memref<32x128xbf16, #tpu.memory_space<vmem>>, %arg6: memref<32x128xf32, #tpu.memory_space<vmem>>) attributes {dimension_semantics = [#tpu.dimension_semantics<parallel>, #tpu.dimension_semantics<parallel>, #tpu.dimension_semantics<arbitrary>], iteration_bounds = array<i64: 1, 1, 1>, scalar_prefetch = 0 : i64, scratch_operands = 1 : i64, tpu.core_type = #tpu.core_type<tc>, window_params = [{transform_indices = @transform_0, window_bounds = array<i64: 32, 128>}, {transform_indices = @transform_1, window_bounds = array<i64: 128, 128>}, {transform_indices = @transform_2, window_bounds = array<i64: 32, 128>}]} {
    %c0_i32 = arith.constant 0 : i32
    %0 = arith.cmpi eq, %arg2, %c0_i32 : i32
    %1 = arith.extui %0 : i1 to i32
    %c0_i32_0 = arith.constant 0 : i32
    %2 = arith.cmpi ne, %1, %c0_i32_0 : i32
    scf.if %2 {
      %cst_10 = arith.constant 0.000000e+00 : f32
      %12 = vector.broadcast %cst_10 : f32 to vector<32x128xf32>
      %c0_11 = arith.constant 0 : index
      %c0_12 = arith.constant 0 : index
      %13 = vector.load %arg6[%c0_11, %c0_12] : memref<32x128xf32, #tpu.memory_space<vmem>>, vector<32x128xf32>
      tpu.vector_store %arg6[%c0_11, %c0_12], %12 {strides = array<i32>} : memref<32x128xf32, #tpu.memory_space<vmem>>, vector<32x128xf32>,
    } else {
    }
    %c0 = arith.constant 0 : index
    %c0_1 = arith.constant 0 : index
    %3 = vector.load %arg6[%c0, %c0_1] : memref<32x128xf32, #tpu.memory_space<vmem>>, vector<32x128xf32>
    %c0_2 = arith.constant 0 : index
    %c0_3 = arith.constant 0 : index
    %4 = vector.load %arg3[%c0_2, %c0_3] : memref<32x128xbf16, #tpu.memory_space<vmem>>, vector<32x128xbf16>
    %c0_4 = arith.constant 0 : index
    %c0_5 = arith.constant 0 : index
    %5 = vector.load %arg4[%c0_4, %c0_5] : memref<128x128xbf16, #tpu.memory_space<vmem>>, vector<128x128xbf16>
    %cst = arith.constant dense<0.000000e+00> : vector<32x128xf32>
    %6 = tpu.matmul %4, %5, %cst {dimension_numbers = #tpu.dot_dimension_numbers<[1], [0], [0], [1], [0, 0, 1, 1], [], []>} : vector<32x128xbf16>, vector<128x128xbf16>, vector<32x128xf32> -> vector<32x128xf32>
    %7 = arith.addf %3, %6 : vector<32x128xf32>
    %c0_6 = arith.constant 0 : index
    %c0_7 = arith.constant 0 : index
    %8 = vector.load %arg6[%c0_6, %c0_7] : memref<32x128xf32, #tpu.memory_space<vmem>>, vector<32x128xf32>
    tpu.vector_store %arg6[%c0_6, %c0_7], %7 {strides = array<i32>} : memref<32x128xf32, #tpu.memory_space<vmem>>, vector<32x128xf32>,
    %c0_i32_8 = arith.constant 0 : i32
    %9 = arith.cmpi eq, %arg2, %c0_i32_8 : i32
    %10 = arith.extui %9 : i1 to i32
    %c0_i32_9 = arith.constant 0 : i32
    %11 = arith.cmpi ne, %10, %c0_i32_9 : i32
    scf.if %11 {
      %c0_10 = arith.constant 0 : index
      %c0_11 = arith.constant 0 : index
      %12 = vector.load %arg6[%c0_10, %c0_11] : memref<32x128xf32, #tpu.memory_space<vmem>>, vector<32x128xf32>
      %13 = arith.truncf %12 : vector<32x128xf32> to vector<32x128xbf16>
      %c0_12 = arith.constant 0 : index
      %c0_13 = arith.constant 0 : index
      %14 = vector.load %arg5[%c0_12, %c0_13] : memref<32x128xbf16, #tpu.memory_space<vmem>>, vector<32x128xbf16>
      tpu.vector_store %arg5[%c0_12, %c0_13], %13 {strides = array<i32>} : memref<32x128xbf16, #tpu.memory_space<vmem>>, vector<32x128xbf16>,
    } else {
    }
    return
  }
  func.func @transform_0(%arg0: i32, %arg1: i32, %arg2: i32) -> (i32, i32) {
    %c0_i32 = arith.constant 0 : i32
    return %arg0, %arg2 : i32, i32
  }
  func.func @transform_1(%arg0: i32, %arg1: i32, %arg2: i32) -> (i32, i32) {
    %c0_i32 = arith.constant 0 : i32
    return %arg2, %arg1 : i32, i32
  }
  func.func @transform_2(%arg0: i32, %arg1: i32, %arg2: i32) -> (i32, i32) {
    %c0_i32 = arith.constant 0 : i32
    return %arg0, %arg1 : i32, i32
  }
}

</mosaic_0001>

<llo_original>
// kernel: tpu_custom_call.1
$region0: #{tpu_custom_call.1}
  #allocation0 [shape = 'u32[]', space=smem, size = 0x4, offset = 0x4, fixed_abs, tag = 'smem constant byte address 0x4 - core index']
  #allocation1 [shape = 'u32[72,128]{1,0:T(1,128)}', space=vmem, size = 0x9000, scoped, tag = 'internal scratch']
  #allocation2 [shape = 'f32[32,128]{1,0:T(8,128)}', space=vmem, size = 0x4000, scoped, tag = 'scratch operand']
  %s0 = inlined_call_operand.hbm [shape: bf16[32,128], index: 0, kind: input, shape index: {}]
  %s1 = inlined_call_operand.hbm [shape: bf16[128,128], index: 1, kind: input, shape index: {}]
  %s2 = inlined_call_operand.hbm [shape: bf16[32,128], index: 2, kind: output, shape index: {}]
  %s3 = sld [smem:[#allocation0]]
  $region34: #{tpu_custom_call.1} parent=0
    _
  %s5 = ssub.s32 1, %s3
  %s6 = scalar_select 0, %s5, %s3
  $region1: #{tpu_custom_call.1} parent=0
    #allocation3 [shape = 'u8[8192]{0}', space=vmem, size = 0x2000, scoped, tag = 'input window, operand 0, single buffered']
    #allocation4 [shape = 's32[1]{0}', space=sflag, size = 0x4, scoped, tag = 'scoped memory for tpu_custom_call.1']
    #allocation5 [shape = 's32[1]{0}', space=sflag, size = 0x4, scoped, tag = 'scoped memory for tpu_custom_call.1']
    #allocation6 [shape = 'u8[32768]{0}', space=vmem, size = 0x8000, scoped, tag = 'input window, operand 1, single buffered']
    #allocation7 [shape = 's32[1]{0}', space=sflag, size = 0x4, scoped, tag = 'scoped memory for tpu_custom_call.1']
    #allocation8 [shape = 'u8[8192]{0}', space=vmem, size = 0x2000, scoped, tag = 'output window, operand 0, single buffered']
    %7 = vsyncpa [#allocation4], 0
    %8 = vsyncpa [#allocation7], 0
    %9 = vsyncpa [#allocation5], 0
    // Predicated region
    $region2: #{tpu_custom_call.1} parent=1 // pred_check
      _
    $region3: #{tpu_custom_call.1} parent=1 // pred_check_branch
      %11 = sbr.rel (0) target = $region5
    $region4: #{tpu_custom_call.1} parent=1 // pred_region
      %13 = vsyncadd [#allocation4], 0
      %s14 = sshll.u32 %s0, 4
      %s15 = int_to_ptr.hbm [resolvable:$true] %s14
      %s16 = sshll.u32 [#allocation3], 4
      %s17 = int_to_ptr.vmem [resolvable:$true] %s16
      %22 = dma.hbm_to_vmem [thread:$0]  %s15, 256, %s17, [#allocation4], 64, 64, 4
    $region5: #{tpu_custom_call.1} parent=1 // pred_fallthru
      _
    // Predicated region
    $region6: #{tpu_custom_call.1} parent=1 // pred_check
      _
    $region7: #{tpu_custom_call.1} parent=1 // pred_check_branch
      %24 = sbr.rel (0) target = $region9
    $region8: #{tpu_custom_call.1} parent=1 // pred_region
      %26 = vsyncadd [#allocation7], 0
      %s27 = sshll.u32 %s1, 4
      %s28 = int_to_ptr.hbm [resolvable:$true] %s27
      %s29 = sshll.u32 [#allocation6], 4
      %s30 = int_to_ptr.vmem [resolvable:$true] %s29
      %35 = dma.hbm_to_vmem [thread:$0]  %s28, 1024, %s30, [#allocation7], 64, 64, 4
    $region9: #{tpu_custom_call.1} parent=1 // pred_fallthru
      _
    // Predicated region
    $region10: #{tpu_custom_call.1} parent=1 // pred_check
      _
    $region11: #{tpu_custom_call.1} parent=1 // pred_check_branch
      %37 = sbr.rel (0) target = $region13
    $region12: #{tpu_custom_call.1} parent=1 // pred_region
      %39 = dma.done [#allocation4], 256
    $region13: #{tpu_custom_call.1} parent=1 // pred_fallthru
      _
    // Predicated region
    $region14: #{tpu_custom_call.1} parent=1 // pred_check
      _
    $region15: #{tpu_custom_call.1} parent=1 // pred_check_branch
      %41 = sbr.rel (0) target = $region17
    $region16: #{tpu_custom_call.1} parent=1 // pred_region
      %43 = dma.done [#allocation7], 1024
    $region17: #{tpu_custom_call.1} parent=1 // pred_fallthru
      _
    %p44 = scmp.eq.s32.totalorder 0, 0
    // Predicated region
    $region18: #{tpu_custom_call.1} parent=1 // pred_check
      %p45 = pneg %p44
    $region19: #{tpu_custom_call.1} parent=1 // pred_check_branch
      %47 = sbr.rel (%p45) target = $region21
    $region20: #{tpu_custom_call.1} parent=1 // pred_region
      %48 = vst [vmem:[#allocation2] sm:$0xff] 0.0
      %49 = vst [vmem:[#allocation2 + $0x8] sm:$0xff] 0.0
      %50 = vst [vmem:[#allocation2 + $0x10] sm:$0xff] 0.0
      %51 = vst [vmem:[#allocation2 + $0x18] sm:$0xff] 0.0
    $region21: #{tpu_custom_call.1} parent=1 // pred_fallthru
      _
    %v52 = vld [vmem:[#allocation2] sm:$0xff]
    %v53 = vld [vmem:[#allocation2 + $0x8] sm:$0xff]
    %v54 = vld [vmem:[#allocation2 + $0x10] sm:$0xff]
    %v55 = vld [vmem:[#allocation2 + $0x18] sm:$0xff]
    %v56 = vld [vmem:[#allocation3] sm:$0xf]
    %v57 = vld [vmem:[#allocation3 + $0x4] sm:$0xf]
    %v58 = vld [vmem:[#allocation3 + $0x8] sm:$0xf]
    %v59 = vld [vmem:[#allocation3 + $0xc] sm:$0xf]
    %v60 = vld [vmem:[#allocation6] sm:$0xf]
    %v61 = vld [vmem:[#allocation6 + $0x4] sm:$0xf]
    %v62 = vld [vmem:[#allocation6 + $0x8] sm:$0xf]
    %v63 = vld [vmem:[#allocation6 + $0xc] sm:$0xf]
    %v64 = vld [vmem:[#allocation6 + $0x10] sm:$0xf]
    %v65 = vld [vmem:[#allocation6 + $0x14] sm:$0xf]
    %v66 = vld [vmem:[#allocation6 + $0x18] sm:$0xf]
    %v67 = vld [vmem:[#allocation6 + $0x1c] sm:$0xf]
    %v68 = vld [vmem:[#allocation6 + $0x20] sm:$0xf]
    %v69 = vld [vmem:[#allocation6 + $0x24] sm:$0xf]
    %v70 = vld [vmem:[#allocation6 + $0x28] sm:$0xf]
    %v71 = vld [vmem:[#allocation6 + $0x2c] sm:$0xf]
    %v72 = vld [vmem:[#allocation6 + $0x30] sm:$0xf]
    %v73 = vld [vmem:[#allocation6 + $0x34] sm:$0xf]
    %v74 = vld [vmem:[#allocation6 + $0x38] sm:$0xf]
    %v75 = vld [vmem:[#allocation6 + $0x3c] sm:$0xf]
    %v80 = vunpack.c.l.b16 %v56
    %v81 = vunpack.c.l.b16 %v57
    %v82 = vunpack.c.l.b16 %v58
    %v83 = vunpack.c.l.b16 %v59
    %v84 = vpack.c.b16 %v81, %v80
    %v85 = vpack.c.b16 %v83, %v82
    %v104 = vunpack.c.l.b16 %v60
    %v105 = vunpack.c.l.b16 %v61
    %v106 = vunpack.c.l.b16 %v62
    %v107 = vunpack.c.l.b16 %v63
    %v108 = vunpack.c.l.b16 %v64
    %v109 = vunpack.c.l.b16 %v65
    %v110 = vunpack.c.l.b16 %v66
    %v111 = vunpack.c.l.b16 %v67
    %v112 = vunpack.c.l.b16 %v68
    %v113 = vunpack.c.l.b16 %v69
    %v114 = vunpack.c.l.b16 %v70
    %v115 = vunpack.c.l.b16 %v71
    %v116 = vunpack.c.l.b16 %v72
    %v117 = vunpack.c.l.b16 %v73
    %v118 = vunpack.c.l.b16 %v74
    %v119 = vunpack.c.l.b16 %v75
    %v120 = vpack.c.b16 %v105, %v104
    %v121 = vpack.c.b16 %v107, %v106
    %v122 = vpack.c.b16 %v109, %v108
    %v123 = vpack.c.b16 %v111, %v110
    %v124 = vpack.c.b16 %v113, %v112
    %v125 = vpack.c.b16 %v115, %v114
    %v126 = vpack.c.b16 %v117, %v116
    %v127 = vpack.c.b16 %v119, %v118
    %136 = vmatpush.bf16.msra.mxu0 %v127
    %137 = vmatpush.bf16.msra.mxu0 %v126
    %138 = vmatpush.bf16.msra.mxu0 %v125
    %139 = vmatpush.bf16.msra.mxu0 %v124
    %140 = vmatpush.bf16.msra.mxu0 %v123
    %141 = vmatpush.bf16.msra.mxu0 %v122
    %142 = vmatpush.bf16.msra.mxu0 %v121
    %143 = vmatpush.bf16.msra.mxu0 %v120
    %144 = vmatmul.bf16.gmra.mxu0 %v84
    %v145 = vpop.f32.mrf.mxu0
    %v146 = vadd.f32 0.0, %v145
    %v147 = vpop.f32.mrf.mxu0
    %v148 = vadd.f32 0.0, %v147
    %149 = vmatmul.bf16.gmra.mxu0 %v85
    %v150 = vpop.f32.mrf.mxu0
    %v151 = vadd.f32 0.0, %v150
    %v152 = vpop.f32.mrf.mxu0
    %v153 = vadd.f32 0.0, %v152
    %154 = vdwg.mxu0
    %v155 = vadd.f32 %v52, %v146
    %v156 = vadd.f32 %v53, %v148
    %v157 = vadd.f32 %v54, %v151
    %v158 = vadd.f32 %v55, %v153
    %159 = vst [vmem:[#allocation2] sm:$0xff] %v155
    %160 = vst [vmem:[#allocation2 + $0x8] sm:$0xff] %v156
    %161 = vst [vmem:[#allocation2 + $0x10] sm:$0xff] %v157
    %162 = vst [vmem:[#allocation2 + $0x18] sm:$0xff] %v158
    // Predicated region
    $region22: #{tpu_custom_call.1} parent=1 // pred_check
      %p163 = pneg %p44
    $region23: #{tpu_custom_call.1} parent=1 // pred_check_branch
      %165 = sbr.rel (%p163) target = $region25
    $region24: #{tpu_custom_call.1} parent=1 // pred_region
      %v166 = vld [vmem:[#allocation2] sm:$0xff]
      %v167 = vld [vmem:[#allocation2 + $0x8] sm:$0xff]
      %v168 = vld [vmem:[#allocation2 + $0x10] sm:$0xff]
      %v169 = vld [vmem:[#allocation2 + $0x18] sm:$0xff]
      %v170 = vpack.c.bf16 %v166, %v166
      %v171 = vpack.c.bf16 %v167, %v167
      %v172 = vpack.c.bf16 %v168, %v168
      %v173 = vpack.c.bf16 %v169, %v169
      %174 = vst [vmem:[#allocation8] sm:$0xf] %v170
      %175 = vst [vmem:[#allocation8 + $0x4] sm:$0xf] %v171
      %176 = vst [vmem:[#allocation8 + $0x8] sm:$0xf] %v172
      %177 = vst [vmem:[#allocation8 + $0xc] sm:$0xf] %v173
    $region25: #{tpu_custom_call.1} parent=1 // pred_fallthru
      _
    // Predicated region
    $region26: #{tpu_custom_call.1} parent=1 // pred_check
      _
    $region27: #{tpu_custom_call.1} parent=1 // pred_check_branch
      %179 = sbr.rel (0) target = $region29
    $region28: #{tpu_custom_call.1} parent=1 // pred_region
      %181 = vsyncadd [#allocation5], 0
      %s182 = sshll.u32 [#allocation8], 4
      %s183 = int_to_ptr.vmem [resolvable:$true] %s182
      %s184 = sshll.u32 %s2, 4
      %s185 = int_to_ptr.hbm [resolvable:$true] %s184
      %190 = dma.vmem_to_hbm [thread:$0]  %s183, 256, %s185, [#allocation5], 64, 64, 4
    $region29: #{tpu_custom_call.1} parent=1 // pred_fallthru
      _
    // Predicated region
    $region30: #{tpu_custom_call.1} parent=1 // pred_check
      _
    $region31: #{tpu_custom_call.1} parent=1 // pred_check_branch
      %192 = sbr.rel (0) target = $region33
    $region32: #{tpu_custom_call.1} parent=1 // pred_region
      %194 = dma.done [#allocation5], 256
    $region33: #{tpu_custom_call.1} parent=1 // pred_fallthru
      _
    %195 = vsyncpa [#allocation4], 1
    %196 = vsyncpa [#allocation7], 1
    %197 = vsyncpa [#allocation5], 1

</llo_original>
